<compile_context>
chip_gen: v7x
topology: tpu7x:2x2x1
jax: 0.10.0
libtpu: 0.0.40
codegen_flags: <defaults>
</compile_context>

<pallas_src>
import functools

import jax
import jax.numpy as jnp
from jax.experimental import pallas as pl
from jax.experimental.pallas import tpu as pltpu


# ----------------------------- Pallas kernel ------------------------------ #

def _double_conv_kernel(x_ref, w1_ref, b1_ref, w2_ref, b2_ref, out_ref,
                        y1_ref, *, B_tile, H):
    """DoubleConv on a slab of B_tile images (batch folded into the MXU M dim).

    x_ref : (Mtot_pad, W*Cin)  bf16; B_tile images, each stored as
            [zero halo row, H data rows, zero halo row] (H padding done in the
            wrapper), plus zero filler rows up to a multiple of 8.
    w1_ref: (3, W*Cin,  W*Cmid) bf16 banded conv1 weights (channel concat,
            W zero-padding and BN scale folded in).
    w2_ref: (3, W*Cmid, W*Cout) bf16 banded conv2 weights (BN scale folded).
    b1/b2 : (1, W*Cmid) / (1, W*Cout) f32 folded BN shifts (lane-tiled).
    out_ref: (B_tile*H, W*Cout) f32.
    y1_ref : (Mtot_pad, W*Cmid) f32 persistent scratch holding the
             halo-structured intermediate consumed by conv2.
    """
    Hp2 = H + 2
    Mtot = B_tile * Hp2            # rows carrying real data (+ per-image halos)
    M = Mtot - 2                   # conv output rows (incl. per-image seams)
    WCm = y1_ref.shape[1]
    WCo = out_ref.shape[1]

    # ---- conv1 (+ folded BN scale) -------------------------------------- #
    # One aligned load of the whole slab; the 3 row taps of the 3x3 conv are
    # three banded matmuls (K = W*Cin, the W taps / W padding / channel concat
    # live inside the banded weights), combined via row-shifted f32 slices of
    # the results so every VMEM access stays aligned and lane-dense.
    xv = x_ref[...]
    q0 = jnp.dot(xv, w1_ref[0], preferred_element_type=jnp.float32)
    q1 = jnp.dot(xv, w1_ref[1], preferred_element_type=jnp.float32)
    q2 = jnp.dot(xv, w1_ref[2], preferred_element_type=jnp.float32)
    acc1 = q0[0:M, :] + q1[1:1 + M, :] + q2[2:2 + M, :]
    y1 = jnp.maximum(acc1 + b1_ref[...], 0.0)      # BN shift + ReLU in f32

    # Rows at per-image seam positions mix neighbouring images -> zero them so
    # conv2's halo reads stay correct.  (No seams when B_tile == 1.)
    if B_tile > 1:
        row_in_img = jax.lax.broadcasted_iota(jnp.int32, (M, WCm), 0) % Hp2
        y1 = jnp.where(row_in_img < H, y1, 0.0)

    # Halo-structured intermediate in persistent VMEM scratch: only the two
    # outermost halo rows are re-zeroed each step (cheap, megacore-safe); the
    # interior is fully overwritten.
    zrow = jnp.zeros((1, WCm), jnp.float32)
    y1_ref[0:1, :] = zrow
    y1_ref[Mtot - 1:Mtot, :] = zrow
    y1_ref[1:Mtot - 1, :] = y1

    # ---- conv2 (+ folded BN scale) -------------------------------------- #
    acc2 = jnp.zeros((M, WCo), jnp.float32)
    for dy in range(3):
        acc2 += jnp.dot(y1_ref[dy:dy + M, :].astype(jnp.bfloat16), w2_ref[dy],
                        preferred_element_type=jnp.float32)
    y2 = jnp.maximum(acc2 + b2_ref[...], 0.0)

    # Store each image's interior rows (lane-dense: W*Cout multiple of 128).
    for b in range(B_tile):
        out_ref[b * H:(b + 1) * H, :] = y2[b * Hp2:b * Hp2 + H, :]


def _double_conv_pallas(x_flat, B1, bias1, B2, bias2, *, batch_tile, H,
                        num_steps):
    """x_flat: (num_steps*Mtot_pad, W*Cin) bf16 -> (N*H, W*Cout) f32."""
    WCin = x_flat.shape[1]
    WCm = B1.shape[2]
    WCo = B2.shape[2]
    Mtot_pad = x_flat.shape[0] // num_steps

    grid_spec = pltpu.PrefetchScalarGridSpec(
        num_scalar_prefetch=0,
        grid=(num_steps,),
        in_specs=[
            pl.BlockSpec((Mtot_pad, WCin), lambda n: (n, 0)),
            # Weights / biases are grid-constant (same block every step).
            pl.BlockSpec((3, WCin, WCm), lambda n: (0, 0, 0)),
            pl.BlockSpec((1, WCm), lambda n: (0, 0)),
            pl.BlockSpec((3, WCm, WCo), lambda n: (0, 0, 0)),
            pl.BlockSpec((1, WCo), lambda n: (0, 0)),
        ],
        out_specs=pl.BlockSpec((batch_tile * H, WCo), lambda n: (n, 0)),
        scratch_shapes=[pltpu.VMEM((Mtot_pad, WCm), jnp.float32)],
    )
    return pl.pallas_call(
        functools.partial(_double_conv_kernel, B_tile=batch_tile, H=H),
        out_shape=jax.ShapeDtypeStruct((num_steps * batch_tile * H, WCo),
                                       jnp.float32),
        grid_spec=grid_spec,
        compiler_params=pltpu.CompilerParams(
            dimension_semantics=("parallel",)),
    )(x_flat, B1, bias1, B2, bias2)


# ------------------------------ JAX glue ---------------------------------- #

def _align_corners_matrix(n_in, n_out):
    """Interpolation matrix for bilinear resize with align_corners=True."""
    if n_in == 1:
        return jnp.ones((n_out, 1), jnp.float32)
    src = jnp.arange(n_out, dtype=jnp.float32) * (n_in - 1) / (n_out - 1)
    lo = jnp.clip(jnp.floor(src).astype(jnp.int32), 0, n_in - 2)
    frac = src - lo.astype(jnp.float32)
    eye = jnp.eye(n_in, dtype=jnp.float32)
    return (1.0 - frac)[:, None] * eye[lo] + frac[:, None] * eye[lo + 1]


def _default_batch_tile(n):
    """Whole batch per grid step on 1-TC chips (v5e/v6e); 2 parallel steps on
    2-TensorCore chips (v7-class) so both cores get work."""
    kind = ""
    try:
        kind = jax.devices()[0].device_kind.lower()
    except Exception:
        pass
    if "v7" in kind and n >= 2 and n % 2 == 0:
        return n // 2
    return n


@functools.partial(jax.jit, static_argnames=("c_out", "batch_tile"))
def up_forward(x1, x2, kp, *, c_out, batch_tile=None):
    """Pallas version.  x1, x2 are NCHW float32; returns NCHW float32."""
    N, C1, H1, W1 = x1.shape
    _, C2, H, W = x2.shape
    WCin = W * (C1 + C2)

    # Bilinear x2 upsample (align_corners=True) fused with NCHW->NHWC.
    Ah = _align_corners_matrix(H1, 2 * H1)
    Aw = _align_corners_matrix(W1, 2 * W1)
    x1u = jnp.einsum('nchw,Hh,Ww->nHWc', x1, Ah, Aw)
    dY = H - x1u.shape[1]
    dX = W - x1u.shape[2]
    x1u = jnp.pad(x1u, ((0, 0), (dY // 2, dY - dY // 2),
                        (dX // 2, dX - dX // 2), (0, 0)))

    # Channel concat folded into the lane axis (lane = w*Cin + c, x2 channels
    # first), per-image H halo rows pre-padded, activations cast to bf16.
    xc = jnp.concatenate([jnp.transpose(x2, (0, 2, 3, 1)), x1u], axis=-1)
    xc = xc.reshape(N, H, WCin)
    xc = jnp.pad(xc, ((0, 0), (1, 1), (0, 0))).astype(jnp.bfloat16)

    if batch_tile is None:
        batch_tile = _default_batch_tile(N)
    assert N % batch_tile == 0, (N, batch_tile)
    num_steps = N // batch_tile
    Mtot = batch_tile * (H + 2)
    Mtot_pad = -(-Mtot // 8) * 8                  # sublane-aligned slab rows
    xs = xc.reshape(num_steps, Mtot, WCin)
    if Mtot_pad != Mtot:
        xs = jnp.pad(xs, ((0, 0), (0, Mtot_pad - Mtot), (0, 0)))
    x_flat = xs.reshape(num_steps * Mtot_pad, WCin)

    yf = _double_conv_pallas(x_flat, kp['B1'], kp['bias1'],
                             kp['B2'], kp['bias2'],
                             batch_tile=batch_tile, H=H, num_steps=num_steps)

    c_out_pad = kp['B2'].shape[2] // W
    y = yf.reshape(N, H, W, c_out_pad)[..., :c_out]
    # TODO(synk): skip this final NHWC->NCHW transpose if the consumer can
    # take the lane-flat (N, H, W*Cout) layout directly.
    return jnp.transpose(y, (0, 3, 1, 2))


# ------------------------- deterministic params ---------------------------- #

def init_params(key, in_channels, out_channels, eps=1e-5):
    """Raw PyTorch-style parameters (OIHW conv weights + BN running stats)."""
    mid = in_channels // 2
    ks = jax.random.split(key, 10)
    return dict(
        w1=jax.random.normal(ks[0], (mid, in_channels, 3, 3), jnp.float32) * 0.1,
        g1=0.5 + jax.random.uniform(ks[1], (mid,), jnp.float32),
        be1=jax.random.normal(ks[2], (mid,), jnp.float32) * 0.1,
        m1=jax.random.normal(ks[3], (mid,), jnp.float32) * 0.1,
        v1=0.5 + jax.random.uniform(ks[4], (mid,), jnp.float32),
        w2=jax.random.normal(ks[5], (out_channels, mid, 3, 3), jnp.float32) * 0.1,
        g2=0.5 + jax.random.uniform(ks[6], (out_channels,), jnp.float32),
        be2=jax.random.normal(ks[7], (out_channels,), jnp.float32) * 0.1,
        m2=jax.random.normal(ks[8], (out_channels,), jnp.float32) * 0.1,
        v2=0.5 + jax.random.uniform(ks[9], (out_channels,), jnp.float32),
        eps=eps,
    )


def fold_and_band_params(raw, W):
    """Fold BN (eval mode) into the conv weights, zero-pad the mid/out channel
    counts so W*C is lane-dense (multiple of 128), and build block-banded
    (W*Cin, W*Cout) matrices that implement the 3x3 conv along W (taps + zero
    padding) as one matmul per row-shift dy.  Banded weights stored in bf16."""
    eps = raw['eps']
    c_mid = raw['w1'].shape[0]
    c_out = raw['w2'].shape[0]

    s1 = raw['g1'] / jnp.sqrt(raw['v1'] + eps)               # (Cmid,)
    s2 = raw['g2'] / jnp.sqrt(raw['v2'] + eps)               # (Cout,)
    w1 = jnp.transpose(raw['w1'], (2, 3, 1, 0)) * s1         # OIHW->HWIO, *scale
    w2 = jnp.transpose(raw['w2'], (2, 3, 1, 0)) * s2
    b1 = raw['be1'] - raw['m1'] * s1
    b2 = raw['be2'] - raw['m2'] * s2

    def lane_dense(c):
        while (W * c) % 128 != 0:
            c += 1
        return c

    c_mid_p, c_out_p = lane_dense(c_mid), lane_dense(c_out)
    w1 = jnp.pad(w1, ((0, 0), (0, 0), (0, 0), (0, c_mid_p - c_mid)))
    b1 = jnp.pad(b1, ((0, c_mid_p - c_mid),))
    w2 = jnp.pad(w2, ((0, 0), (0, 0), (0, c_mid_p - c_mid),
                      (0, c_out_p - c_out)))
    b2 = jnp.pad(b2, ((0, c_out_p - c_out),))

    def banded(w_taps):
        # w_taps: (3, Cp, Cq) over dx -> (W*Cp, W*Cq) block-banded matrix with
        # B[xin*Cp+ci, xout*Cq+co] = w_taps[dx, ci, co] iff xin == xout+dx-1.
        return sum(jnp.kron(jnp.eye(W, W, k=1 - dx, dtype=jnp.float32),
                            w_taps[dx]) for dx in range(3))

    B1 = jnp.stack([banded(w1[dy]) for dy in range(3)]).astype(jnp.bfloat16)
    B2 = jnp.stack([banded(w2[dy]) for dy in range(3)]).astype(jnp.bfloat16)
    return dict(B1=B1, B2=B2,
                bias1=jnp.tile(b1, W)[None, :],
                bias2=jnp.tile(b2, W)[None, :])


# ---------------------------- pure-JAX reference --------------------------- #

def _conv_bn_relu_ref(x, w_oihw, g, b, m, v, eps):
    y = jax.lax.conv_general_dilated(
        x, w_oihw, window_strides=(1, 1), padding=((1, 1), (1, 1)),
        dimension_numbers=('NCHW', 'OIHW', 'NCHW'),
        precision=jax.lax.Precision.HIGHEST)
    y = (y - m[None, :, None, None]) / jnp.sqrt(v + eps)[None, :, None, None]
    y = y * g[None, :, None, None] + b[None, :, None, None]
    return jnp.maximum(y, 0.0)


def up_forward_ref(x1, x2, raw):
    _, _, H1, W1 = x1.shape
    _, _, H2, W2 = x2.shape
    Ah = _align_corners_matrix(H1, 2 * H1)
    Aw = _align_corners_matrix(W1, 2 * W1)
    x1u = jnp.einsum('nchw,Hh,Ww->ncHW', x1, Ah, Aw,
                     precision=jax.lax.Precision.HIGHEST)
    dY = H2 - x1u.shape[2]
    dX = W2 - x1u.shape[3]
    x1p = jnp.pad(x1u, ((0, 0), (0, 0),
                        (dY // 2, dY - dY // 2), (dX // 2, dX - dX // 2)))
    x = jnp.concatenate([x2, x1p], axis=1)
    y = _conv_bn_relu_ref(x, raw['w1'], raw['g1'], raw['be1'],
                          raw['m1'], raw['v1'], raw['eps'])
    y = _conv_bn_relu_ref(y, raw['w2'], raw['g2'], raw['be2'],
                          raw['m2'], raw['v2'], raw['eps'])
    return y


# --------------------------------- main ------------------------------------ #

if __name__ == "__main__":
    key = jax.random.PRNGKey(0)
    k1, k2, kw = jax.random.split(key, 3)

    in_channels, out_channels = 8, 8
    N, H1, W1 = 2, 8, 8
    H, W = 2 * H1, 2 * W1
    # UNet-style: x1 comes from below (in_channels//2 ch, half resolution),
    # x2 is the skip connection (in_channels//2 ch, full resolution).
    x1 = jax.random.normal(k1, (N, in_channels // 2, H1, W1), jnp.float32)
    x2 = jax.random.normal(k2, (N, in_channels - in_channels // 2, H, W),
                           jnp.float32)

    raw = init_params(kw, in_channels, out_channels)
    kparams = fold_and_band_params(raw, W=W)

    out = jax.block_until_ready(
        up_forward(x1, x2, kparams, c_out=out_channels))
    assert out.shape == (N, out_channels, H, W), out.shape

    ref = up_forward_ref(x1, x2, raw)
    err = float(jnp.max(jnp.abs(out - ref)))
    # bf16 weights/activations + single-pass MXU (f32 accumulation) vs. a
    # full-f32 HIGHEST-precision reference -> allow a bf16-class error envelope.
    assert err < 8e-2, f"max abs err vs reference: {err}"

    print("KERNEL_OK")
</pallas_src>

<mosaic_0001>
module attributes {stable_mosaic.version = 11 : i64} {
  func.func @_double_conv_kernel(%arg0: i32, %arg1: memref<40x128xbf16, #tpu.memory_space<vmem>>, %arg2: memref<3x128x128xbf16, #tpu.memory_space<vmem>>, %arg3: memref<1x128xf32, #tpu.memory_space<vmem>>, %arg4: memref<3x128x128xbf16, #tpu.memory_space<vmem>>, %arg5: memref<1x128xf32, #tpu.memory_space<vmem>>, %arg6: memref<32x128xf32, #tpu.memory_space<vmem>>, %arg7: memref<40x128xf32, #tpu.memory_space<vmem>>) attributes {dimension_semantics = [#tpu.dimension_semantics<parallel>], iteration_bounds = array<i64: 1>, scalar_prefetch = 0 : i64, scratch_operands = 1 : i64, tpu.core_type = #tpu.core_type<tc>, window_params = [{transform_indices = @transform_0, window_bounds = array<i64: 40, 128>}, {pipeline_mode = #tpu.pipeline_mode<synchronous>, transform_indices = @transform_1, window_bounds = array<i64: 3, 128, 128>}, {pipeline_mode = #tpu.pipeline_mode<synchronous>, transform_indices = @transform_2, window_bounds = array<i64: 1, 128>}, {pipeline_mode = #tpu.pipeline_mode<synchronous>, transform_indices = @transform_3, window_bounds = array<i64: 3, 128, 128>}, {pipeline_mode = #tpu.pipeline_mode<synchronous>, transform_indices = @transform_4, window_bounds = array<i64: 1, 128>}, {transform_indices = @transform_5, window_bounds = array<i64: 32, 128>}]} {
    %c0 = arith.constant 0 : index
    %c0_0 = arith.constant 0 : index
    %0 = vector.load %arg1[%c0, %c0_0] : memref<40x128xbf16, #tpu.memory_space<vmem>>, vector<40x128xbf16>
    %c0_1 = arith.constant 0 : index
    %c0_2 = arith.constant 0 : index
    %c0_3 = arith.constant 0 : index
    %1 = vector.load %arg2[%c0_1, %c0_2, %c0_3] : memref<3x128x128xbf16, #tpu.memory_space<vmem>>, vector<1x128x128xbf16>
    %2 = vector.shape_cast %1 : vector<1x128x128xbf16> to vector<128x128xbf16>
    %cst = arith.constant dense<0.000000e+00> : vector<40x128xf32>
    %3 = tpu.matmul %0, %2, %cst {dimension_numbers = #tpu.dot_dimension_numbers<[1], [0], [0], [1], [0, 0, 1, 1], [], []>} : vector<40x128xbf16>, vector<128x128xbf16>, vector<40x128xf32> -> vector<40x128xf32>
    %c1 = arith.constant 1 : index
    %c0_4 = arith.constant 0 : index
    %c0_5 = arith.constant 0 : index
    %4 = vector.load %arg2[%c1, %c0_4, %c0_5] : memref<3x128x128xbf16, #tpu.memory_space<vmem>>, vector<1x128x128xbf16>
    %5 = vector.shape_cast %4 : vector<1x128x128xbf16> to vector<128x128xbf16>
    %cst_6 = arith.constant dense<0.000000e+00> : vector<40x128xf32>
    %6 = tpu.matmul %0, %5, %cst_6 {dimension_numbers = #tpu.dot_dimension_numbers<[1], [0], [0], [1], [0, 0, 1, 1], [], []>} : vector<40x128xbf16>, vector<128x128xbf16>, vector<40x128xf32> -> vector<40x128xf32>
    %c2 = arith.constant 2 : index
    %c0_7 = arith.constant 0 : index
    %c0_8 = arith.constant 0 : index
    %7 = vector.load %arg2[%c2, %c0_7, %c0_8] : memref<3x128x128xbf16, #tpu.memory_space<vmem>>, vector<1x128x128xbf16>
    %8 = vector.shape_cast %7 : vector<1x128x128xbf16> to vector<128x128xbf16>
    %cst_9 = arith.constant dense<0.000000e+00> : vector<40x128xf32>
    %9 = tpu.matmul %0, %8, %cst_9 {dimension_numbers = #tpu.dot_dimension_numbers<[1], [0], [0], [1], [0, 0, 1, 1], [], []>} : vector<40x128xbf16>, vector<128x128xbf16>, vector<40x128xf32> -> vector<40x128xf32>
    %10 = vector.extract_strided_slice %3 {offsets = [0, 0], sizes = [34, 128], strides = [1, 1]} : vector<40x128xf32> to vector<34x128xf32>
    %11 = vector.extract_strided_slice %6 {offsets = [1, 0], sizes = [34, 128], strides = [1, 1]} : vector<40x128xf32> to vector<34x128xf32>
    %12 = arith.addf %10, %11 : vector<34x128xf32>
    %13 = vector.extract_strided_slice %9 {offsets = [2, 0], sizes = [34, 128], strides = [1, 1]} : vector<40x128xf32> to vector<34x128xf32>
    %14 = arith.addf %12, %13 : vector<34x128xf32>
    %c0_10 = arith.constant 0 : index
    %c0_11 = arith.constant 0 : index
    %15 = vector.load %arg3[%c0_10, %c0_11] : memref<1x128xf32, #tpu.memory_space<vmem>>, vector<1x128xf32>
    %16 = vector.broadcast %15 : vector<1x128xf32> to vector<34x128xf32>
    %17 = arith.addf %14, %16 : vector<34x128xf32>
    %cst_12 = arith.constant 0.000000e+00 : f32
    %18 = vector.broadcast %cst_12 : f32 to vector<34x128xf32>
    %19 = arith.maximumf %17, %18 : vector<34x128xf32>
    %20 = tpu.iota {dimensions = array<i32: 0>} : vector<34x128xi32>
    %c18_i32 = arith.constant 18 : i32
    %c0_i32 = arith.constant 0 : i32
    %21 = arith.cmpi eq, %c18_i32, %c0_i32 : i32
    %c1_i32 = arith.constant 1 : i32
    %22 = arith.select %21, %c1_i32, %c18_i32 : i32
    %23 = vector.broadcast %22 : i32 to vector<34x128xi32>
    %24 = arith.remsi %20, %23 : vector<34x128xi32>
    %c0_i32_13 = arith.constant 0 : i32
    %25 = vector.broadcast %c0_i32_13 : i32 to vector<34x128xi32>
    %26 = arith.cmpi ne, %24, %25 : vector<34x128xi32>
    %c0_i32_14 = arith.constant 0 : i32
    %27 = vector.broadcast %c0_i32_14 : i32 to vector<34x128xi32>
    %28 = arith.cmpi slt, %24, %27 : vector<34x128xi32>
    %c0_i32_15 = arith.constant 0 : i32
    %29 = arith.cmpi slt, %22, %c0_i32_15 : i32
    %30 = vector.broadcast %29 : i1 to vector<34x128xi1>
    %31 = vector.broadcast %30 : vector<34x128xi1> to vector<34x128xi1>
    %32 = arith.xori %28, %31 : vector<34x128xi1>
    %33 = arith.andi %32, %26 : vector<34x128xi1>
    %34 = vector.broadcast %22 : i32 to vector<34x128xi32>
    %35 = arith.addi %24, %34 : vector<34x128xi32>
    %36 = arith.select %33, %35, %24 : vector<34x128xi1>, vector<34x128xi32>
    %c16_i32 = arith.constant 16 : i32
    %37 = vector.broadcast %c16_i32 : i32 to vector<34x128xi32>
    %38 = arith.cmpi slt, %36, %37 : vector<34x128xi32>
    %cst_16 = arith.constant 0.000000e+00 : f32
    %39 = vector.broadcast %cst_16 : f32 to vector<34x128xf32>
    %40 = arith.select %38, %19, %39 : vector<34x128xi1>, vector<34x128xf32>
    %cst_17 = arith.constant 0.000000e+00 : f32
    %41 = vector.broadcast %cst_17 : f32 to vector<1x128xf32>
    %c0_18 = arith.constant 0 : index
    %c0_19 = arith.constant 0 : index
    %42 = vector.load %arg7[%c0_18, %c0_19] : memref<40x128xf32, #tpu.memory_space<vmem>>, vector<1x128xf32>
    tpu.vector_store %arg7[%c0_18, %c0_19], %41 {strides = array<i32>} : memref<40x128xf32, #tpu.memory_space<vmem>>, vector<1x128xf32>,
    %c35 = arith.constant 35 : index
    %c0_20 = arith.constant 0 : index
    %43 = vector.load %arg7[%c35, %c0_20] : memref<40x128xf32, #tpu.memory_space<vmem>>, vector<1x128xf32>
    tpu.vector_store %arg7[%c35, %c0_20], %41 {strides = array<i32>} : memref<40x128xf32, #tpu.memory_space<vmem>>, vector<1x128xf32>,
    %c1_21 = arith.constant 1 : index
    %c0_22 = arith.constant 0 : index
    %44 = vector.load %arg7[%c1_21, %c0_22] : memref<40x128xf32, #tpu.memory_space<vmem>>, vector<34x128xf32>
    tpu.vector_store %arg7[%c1_21, %c0_22], %40 {strides = array<i32>} : memref<40x128xf32, #tpu.memory_space<vmem>>, vector<34x128xf32>,
    %cst_23 = arith.constant 0.000000e+00 : f32
    %45 = vector.broadcast %cst_23 : f32 to vector<34x128xf32>
    %c0_24 = arith.constant 0 : index
    %c0_25 = arith.constant 0 : index
    %46 = vector.load %arg7[%c0_24, %c0_25] : memref<40x128xf32, #tpu.memory_space<vmem>>, vector<34x128xf32>
    %47 = arith.truncf %46 : vector<34x128xf32> to vector<34x128xbf16>
    %c0_26 = arith.constant 0 : index
    %c0_27 = arith.constant 0 : index
    %c0_28 = arith.constant 0 : index
    %48 = vector.load %arg4[%c0_26, %c0_27, %c0_28] : memref<3x128x128xbf16, #tpu.memory_space<vmem>>, vector<1x128x128xbf16>
    %49 = vector.shape_cast %48 : vector<1x128x128xbf16> to vector<128x128xbf16>
    %cst_29 = arith.constant dense<0.000000e+00> : vector<34x128xf32>
    %50 = tpu.matmul %47, %49, %cst_29 {dimension_numbers = #tpu.dot_dimension_numbers<[1], [0], [0], [1], [0, 0, 1, 1], [], []>} : vector<34x128xbf16>, vector<128x128xbf16>, vector<34x128xf32> -> vector<34x128xf32>
    %51 = arith.addf %45, %50 : vector<34x128xf32>
    %c1_30 = arith.constant 1 : index
    %c0_31 = arith.constant 0 : index
    %52 = vector.load %arg7[%c1_30, %c0_31] : memref<40x128xf32, #tpu.memory_space<vmem>>, vector<34x128xf32>
    %53 = arith.truncf %52 : vector<34x128xf32> to vector<34x128xbf16>
    %c1_32 = arith.constant 1 : index
    %c0_33 = arith.constant 0 : index
    %c0_34 = arith.constant 0 : index
    %54 = vector.load %arg4[%c1_32, %c0_33, %c0_34] : memref<3x128x128xbf16, #tpu.memory_space<vmem>>, vector<1x128x128xbf16>
    %55 = vector.shape_cast %54 : vector<1x128x128xbf16> to vector<128x128xbf16>
    %cst_35 = arith.constant dense<0.000000e+00> : vector<34x128xf32>
    %56 = tpu.matmul %53, %55, %cst_35 {dimension_numbers = #tpu.dot_dimension_numbers<[1], [0], [0], [1], [0, 0, 1, 1], [], []>} : vector<34x128xbf16>, vector<128x128xbf16>, vector<34x128xf32> -> vector<34x128xf32>
    %57 = arith.addf %51, %56 : vector<34x128xf32>
    %c2_36 = arith.constant 2 : index
    %c0_37 = arith.constant 0 : index
    %58 = vector.load %arg7[%c2_36, %c0_37] : memref<40x128xf32, #tpu.memory_space<vmem>>, vector<34x128xf32>
    %59 = arith.truncf %58 : vector<34x128xf32> to vector<34x128xbf16>
    %c2_38 = arith.constant 2 : index
    %c0_39 = arith.constant 0 : index
    %c0_40 = arith.constant 0 : index
    %60 = vector.load %arg4[%c2_38, %c0_39, %c0_40] : memref<3x128x128xbf16, #tpu.memory_space<vmem>>, vector<1x128x128xbf16>
    %61 = vector.shape_cast %60 : vector<1x128x128xbf16> to vector<128x128xbf16>
    %cst_41 = arith.constant dense<0.000000e+00> : vector<34x128xf32>
    %62 = tpu.matmul %59, %61, %cst_41 {dimension_numbers = #tpu.dot_dimension_numbers<[1], [0], [0], [1], [0, 0, 1, 1], [], []>} : vector<34x128xbf16>, vector<128x128xbf16>, vector<34x128xf32> -> vector<34x128xf32>
    %63 = arith.addf %57, %62 : vector<34x128xf32>
    %c0_42 = arith.constant 0 : index
    %c0_43 = arith.constant 0 : index
    %64 = vector.load %arg5[%c0_42, %c0_43] : memref<1x128xf32, #tpu.memory_space<vmem>>, vector<1x128xf32>
    %65 = vector.broadcast %64 : vector<1x128xf32> to vector<34x128xf32>
    %66 = arith.addf %63, %65 : vector<34x128xf32>
    %cst_44 = arith.constant 0.000000e+00 : f32
    %67 = vector.broadcast %cst_44 : f32 to vector<34x128xf32>
    %68 = arith.maximumf %66, %67 : vector<34x128xf32>
    %69 = vector.extract_strided_slice %68 {offsets = [0, 0], sizes = [16, 128], strides = [1, 1]} : vector<34x128xf32> to vector<16x128xf32>
    %c0_45 = arith.constant 0 : index
    %c0_46 = arith.constant 0 : index
    %70 = vector.load %arg6[%c0_45, %c0_46] : memref<32x128xf32, #tpu.memory_space<vmem>>, vector<16x128xf32>
    tpu.vector_store %arg6[%c0_45, %c0_46], %69 {strides = array<i32>} : memref<32x128xf32, #tpu.memory_space<vmem>>, vector<16x128xf32>,
    %71 = vector.extract_strided_slice %68 {offsets = [18, 0], sizes = [16, 128], strides = [1, 1]} : vector<34x128xf32> to vector<16x128xf32>
    %c16 = arith.constant 16 : index
    %c0_47 = arith.constant 0 : index
    %72 = vector.load %arg6[%c16, %c0_47] : memref<32x128xf32, #tpu.memory_space<vmem>>, vector<16x128xf32>
    tpu.vector_store %arg6[%c16, %c0_47], %71 {strides = array<i32>} : memref<32x128xf32, #tpu.memory_space<vmem>>, vector<16x128xf32>,
    return
  }
  func.func @transform_0(%arg0: i32) -> (i32, i32) {
    %c0_i32 = arith.constant 0 : i32
    %c0_i32_0 = arith.constant 0 : i32
    return %arg0, %c0_i32 : i32, i32
  }
  func.func @transform_1(%arg0: i32) -> (i32, i32, i32) {
    %c0_i32 = arith.constant 0 : i32
    %c0_i32_0 = arith.constant 0 : i32
    %c0_i32_1 = arith.constant 0 : i32
    %c0_i32_2 = arith.constant 0 : i32
    return %c0_i32, %c0_i32_0, %c0_i32_1 : i32, i32, i32
  }
  func.func @transform_2(%arg0: i32) -> (i32, i32) {
    %c0_i32 = arith.constant 0 : i32
    %c0_i32_0 = arith.constant 0 : i32
    %c0_i32_1 = arith.constant 0 : i32
    return %c0_i32, %c0_i32_0 : i32, i32
  }
  func.func @transform_3(%arg0: i32) -> (i32, i32, i32) {
    %c0_i32 = arith.constant 0 : i32
    %c0_i32_0 = arith.constant 0 : i32
    %c0_i32_1 = arith.constant 0 : i32
    %c0_i32_2 = arith.constant 0 : i32
    return %c0_i32, %c0_i32_0, %c0_i32_1 : i32, i32, i32
  }
  func.func @transform_4(%arg0: i32) -> (i32, i32) {
    %c0_i32 = arith.constant 0 : i32
    %c0_i32_0 = arith.constant 0 : i32
    %c0_i32_1 = arith.constant 0 : i32
    return %c0_i32, %c0_i32_0 : i32, i32
  }
  func.func @transform_5(%arg0: i32) -> (i32, i32) {
    %c0_i32 = arith.constant 0 : i32
    %c0_i32_0 = arith.constant 0 : i32
    return %arg0, %c0_i32 : i32, i32
  }
}

</mosaic_0001>

<llo_original>
// kernel: up_forward.1
$region0: #{up_forward.1}
  #allocation0 [shape = 'u32[]', space=smem, size = 0x4, offset = 0x4, fixed_abs, tag = 'smem constant byte address 0x4 - core index']
  #allocation1 [shape = 'u32[144,128]{1,0:T(1,128)}', space=vmem, size = 0x12000, scoped, tag = 'internal scratch']
  #allocation2 [shape = 'f32[40,128]{1,0:T(8,128)}', space=vmem, size = 0x5000, scoped, tag = 'scratch operand']
  %s0 = inlined_call_operand.vmem [shape: bf16[40,128], index: 0, kind: input, shape index: {}]
  %s1 = inlined_call_operand.vmem [shape: bf16[3,128,128], index: 1, kind: input, shape index: {}]
  %s2 = inlined_call_operand.vmem [shape: f32[1,128], index: 2, kind: input, shape index: {}]
  %s3 = inlined_call_operand.vmem [shape: bf16[3,128,128], index: 3, kind: input, shape index: {}]
  %s4 = inlined_call_operand.vmem [shape: f32[1,128], index: 4, kind: input, shape index: {}]
  %s5 = inlined_call_operand.vmem [shape: f32[32,128], index: 5, kind: output, shape index: {}]
  %s6 = sld [smem:[#allocation0]]
  $region30: #{up_forward.1} parent=0
    _
  %s8 = ssub.s32 1, %s6
  %s9 = scalar_select 0, %s8, %s6
  // Predicated region
  $region2: #{up_forward.1} parent=0 // pred_check
    _
  $region3: #{up_forward.1} parent=0 // pred_check_branch
    %11 = sbr.rel (0) target = $region5
  $region4: #{up_forward.1} parent=0 // pred_region
    _
  $region5: #{up_forward.1} parent=0 // pred_fallthru
    _
  // Predicated region
  $region6: #{up_forward.1} parent=0 // pred_check
    _
  $region7: #{up_forward.1} parent=0 // pred_check_branch
    %13 = sbr.rel (0) target = $region9
  $region8: #{up_forward.1} parent=0 // pred_region
    _
  $region9: #{up_forward.1} parent=0 // pred_fallthru
    _
  // Predicated region
  $region10: #{up_forward.1} parent=0 // pred_check
    _
  $region11: #{up_forward.1} parent=0 // pred_check_branch
    %15 = sbr.rel (0) target = $region13
  $region12: #{up_forward.1} parent=0 // pred_region
    _
  $region13: #{up_forward.1} parent=0 // pred_fallthru
    _
  // Predicated region
  $region14: #{up_forward.1} parent=0 // pred_check
    _
  $region15: #{up_forward.1} parent=0 // pred_check_branch
    %17 = sbr.rel (0) target = $region17
  $region16: #{up_forward.1} parent=0 // pred_region
    _
  $region17: #{up_forward.1} parent=0 // pred_fallthru
    _
  // Predicated region
  $region18: #{up_forward.1} parent=0 // pred_check
    _
  $region19: #{up_forward.1} parent=0 // pred_check_branch
    %19 = sbr.rel (0) target = $region21
  $region20: #{up_forward.1} parent=0 // pred_region
    _
  $region21: #{up_forward.1} parent=0 // pred_fallthru
    _
  %v21 = vld [vmem:[%s0] sm:$0xf]
  %v22 = vld [vmem:[%s0 + $0x4] sm:$0xf]
  %v23 = vld [vmem:[%s0 + $0x8] sm:$0xf]
  %v24 = vld [vmem:[%s0 + $0xc] sm:$0xf]
  %v25 = vld [vmem:[%s0 + $0x10] sm:$0xf]
  %v26 = vld [vmem:[%s1] sm:$0xf]
  %v27 = vld [vmem:[%s1 + $0x4] sm:$0xf]
  %v28 = vld [vmem:[%s1 + $0x8] sm:$0xf]
  %v29 = vld [vmem:[%s1 + $0xc] sm:$0xf]
  %v30 = vld [vmem:[%s1 + $0x10] sm:$0xf]
  %v31 = vld [vmem:[%s1 + $0x14] sm:$0xf]
  %v32 = vld [vmem:[%s1 + $0x18] sm:$0xf]
  %v33 = vld [vmem:[%s1 + $0x1c] sm:$0xf]
  %v34 = vld [vmem:[%s1 + $0x20] sm:$0xf]
  %v35 = vld [vmem:[%s1 + $0x24] sm:$0xf]
  %v36 = vld [vmem:[%s1 + $0x28] sm:$0xf]
  %v37 = vld [vmem:[%s1 + $0x2c] sm:$0xf]
  %v38 = vld [vmem:[%s1 + $0x30] sm:$0xf]
  %v39 = vld [vmem:[%s1 + $0x34] sm:$0xf]
  %v40 = vld [vmem:[%s1 + $0x38] sm:$0xf]
  %v41 = vld [vmem:[%s1 + $0x3c] sm:$0xf]
  %v47 = vunpack.c.l.b16 %v21
  %v48 = vunpack.c.l.b16 %v22
  %v49 = vunpack.c.l.b16 %v23
  %v50 = vunpack.c.l.b16 %v24
  %v51 = vunpack.c.l.b16 %v25
  %v52 = vpack.c.b16 %v48, %v47
  %v53 = vpack.c.b16 %v50, %v49
  %v54 = vpack.c.b16 %v51, %v51
  %v74 = vunpack.c.l.b16 %v26
  %v75 = vunpack.c.l.b16 %v27
  %v76 = vunpack.c.l.b16 %v28
  %v77 = vunpack.c.l.b16 %v29
  %v78 = vunpack.c.l.b16 %v30
  %v79 = vunpack.c.l.b16 %v31
  %v80 = vunpack.c.l.b16 %v32
  %v81 = vunpack.c.l.b16 %v33
  %v82 = vunpack.c.l.b16 %v34
  %v83 = vunpack.c.l.b16 %v35
  %v84 = vunpack.c.l.b16 %v36
  %v85 = vunpack.c.l.b16 %v37
  %v86 = vunpack.c.l.b16 %v38
  %v87 = vunpack.c.l.b16 %v39
  %v88 = vunpack.c.l.b16 %v40
  %v89 = vunpack.c.l.b16 %v41
  %v90 = vpack.c.b16 %v75, %v74
  %v91 = vpack.c.b16 %v77, %v76
  %v92 = vpack.c.b16 %v79, %v78
  %v93 = vpack.c.b16 %v81, %v80
  %v94 = vpack.c.b16 %v83, %v82
  %v95 = vpack.c.b16 %v85, %v84
  %v96 = vpack.c.b16 %v87, %v86
  %v97 = vpack.c.b16 %v89, %v88
  %106 = vmatprep.subr.bf16.mxu0 0
  %107 = vmatpush1.bf16.msra.mxu0 %v90
  %108 = vmatprep.subr.bf16.mxu0 0
  %109 = vmatpush1.bf16.msra.mxu0 %v91
  %110 = vmatprep.subr.bf16.mxu0 0
  %111 = vmatpush1.bf16.msra.mxu0 %v92
  %112 = vmatprep.subr.bf16.mxu0 0
  %113 = vmatpush1.bf16.msra.mxu0 %v93
  %114 = vmatprep.subr.bf16.mxu0 0
  %115 = vmatpush1.bf16.msra.mxu0 %v94
  %116 = vmatprep.subr.bf16.mxu0 0
  %117 = vmatpush1.bf16.msra.mxu0 %v95
  %118 = vmatprep.subr.bf16.mxu0 0
  %119 = vmatpush1.bf16.msra.mxu0 %v96
  %120 = vmatprep.subr.bf16.mxu0 0
  %121 = vmatpush1.bf16.msra.mxu0 %v97
  %122 = vmatprep.subr.bf16.mxu0 0
  %123 = vmatpush1.bf16.msra.mxu0 0
  %124 = vmatprep.subr.bf16.mxu0 0
  %125 = vmatpush1.bf16.msra.mxu0 0
  %126 = vmatprep.subr.bf16.mxu0 0
  %127 = vmatpush1.bf16.msra.mxu0 0
  %128 = vmatprep.subr.bf16.mxu0 0
  %129 = vmatpush1.bf16.msra.mxu0 0
  %130 = vmatprep.subr.bf16.mxu0 0
  %131 = vmatpush1.bf16.msra.mxu0 0
  %132 = vmatprep.subr.bf16.mxu0 0
  %133 = vmatpush1.bf16.msra.mxu0 0
  %134 = vmatprep.subr.bf16.mxu0 0
  %135 = vmatpush1.bf16.msra.mxu0 0
  %136 = vmatprep.subr.bf16.mxu0 0
  %137 = vmatpush1.bf16.msra.mxu0 0
  %138 = vmatprep.mubr.bf16.mxu0 0
  %139 = vmatmul.mubr.bf16.gmra.mrb[0].mxu0 %v52
  %v140 = vpop.f32.mrb[0].mxu0
  %v141 = vadd.f32 0.0, %v140
  %v142 = vpop.f32.mrb[0].mxu0
  %v143 = vpop.f32.mrb[0].mxu0
  %v144 = vadd.f32 0.0, %v143
  %v145 = vpop.f32.mrb[0].mxu0
  %146 = vmatprep.mubr.bf16.mxu0 0
  %147 = vmatmul.mubr.bf16.gmra.mrb[0].mxu0 %v53
  %v148 = vpop.f32.mrb[0].mxu0
  %v149 = vadd.f32 0.0, %v148
  %v150 = vpop.f32.mrb[0].mxu0
  %v151 = vpop.f32.mrb[0].mxu0
  %v152 = vadd.f32 0.0, %v151
  %v153 = vpop.f32.mrb[0].mxu0
  %154 = vmatprep.mubr.bf16.mxu0 0
  %155 = vmatmul.mubr.bf16.gmra.mrb[0].mxu0 %v54
  %v156 = vpop.f32.mrb[0].mxu0
  %v157 = vadd.f32 0.0, %v156
  %v158 = vpop.f32.mrb[0].mxu0
  %v159 = vpop.f32.mrb[0].mxu0
  %v160 = vpop.f32.mrb[0].mxu0
  %161 = vdwg.mxu0
  %s162 = scalar_lea.vmem %s1, 64
  %v163 = vld [vmem:[%s162] sm:$0xf]
  %v164 = vld [vmem:[%s162 + $0x4] sm:$0xf]
  %v165 = vld [vmem:[%s162 + $0x8] sm:$0xf]
  %v166 = vld [vmem:[%s162 + $0xc] sm:$0xf]
  %v167 = vld [vmem:[%s162 + $0x10] sm:$0xf]
  %v168 = vld [vmem:[%s162 + $0x14] sm:$0xf]
  %v169 = vld [vmem:[%s162 + $0x18] sm:$0xf]
  %v170 = vld [vmem:[%s162 + $0x1c] sm:$0xf]
  %v171 = vld [vmem:[%s162 + $0x20] sm:$0xf]
  %v172 = vld [vmem:[%s162 + $0x24] sm:$0xf]
  %v173 = vld [vmem:[%s162 + $0x28] sm:$0xf]
  %v174 = vld [vmem:[%s162 + $0x2c] sm:$0xf]
  %v175 = vld [vmem:[%s162 + $0x30] sm:$0xf]
  %v176 = vld [vmem:[%s162 + $0x34] sm:$0xf]
  %v177 = vld [vmem:[%s162 + $0x38] sm:$0xf]
  %v178 = vld [vmem:[%s162 + $0x3c] sm:$0xf]
  %v195 = vunpack.c.l.b16 %v163
  %v196 = vunpack.c.l.b16 %v164
  %v197 = vunpack.c.l.b16 %v165
  %v198 = vunpack.c.l.b16 %v166
  %v199 = vunpack.c.l.b16 %v167
  %v200 = vunpack.c.l.b16 %v168
  %v201 = vunpack.c.l.b16 %v169
  %v202 = vunpack.c.l.b16 %v170
  %v203 = vunpack.c.l.b16 %v171
  %v204 = vunpack.c.l.b16 %v172
  %v205 = vunpack.c.l.b16 %v173
  %v206 = vunpack.c.l.b16 %v174
  %v207 = vunpack.c.l.b16 %v175
  %v208 = vunpack.c.l.b16 %v176
  %v209 = vunpack.c.l.b16 %v177
  %v210 = vunpack.c.l.b16 %v178
  %v211 = vpack.c.b16 %v196, %v195
  %v212 = vpack.c.b16 %v198, %v197
  %v213 = vpack.c.b16 %v200, %v199
  %v214 = vpack.c.b16 %v202, %v201
  %v215 = vpack.c.b16 %v204, %v203
  %v216 = vpack.c.b16 %v206, %v205
  %v217 = vpack.c.b16 %v208, %v207
  %v218 = vpack.c.b16 %v210, %v209
  %227 = vmatprep.subr.bf16.mxu0 0
  %228 = vmatpush1.bf16.msra.mxu0 %v211
  %229 = vmatprep.subr.bf16.mxu0 0
  %230 = vmatpush1.bf16.msra.mxu0 %v212
  %231 = vmatprep.subr.bf16.mxu0 0
  %232 = vmatpush1.bf16.msra.mxu0 %v213
  %233 = vmatprep.subr.bf16.mxu0 0
  %234 = vmatpush1.bf16.msra.mxu0 %v214
  %235 = vmatprep.subr.bf16.mxu0 0
  %236 = vmatpush1.bf16.msra.mxu0 %v215
  %237 = vmatprep.subr.bf16.mxu0 0
  %238 = vmatpush1.bf16.msra.mxu0 %v216
  %239 = vmatprep.subr.bf16.mxu0 0
  %240 = vmatpush1.bf16.msra.mxu0 %v217
  %241 = vmatprep.subr.bf16.mxu0 0
  %242 = vmatpush1.bf16.msra.mxu0 %v218
  %243 = vmatprep.subr.bf16.mxu0 0
  %244 = vmatpush1.bf16.msra.mxu0 0
  %245 = vmatprep.subr.bf16.mxu0 0
  %246 = vmatpush1.bf16.msra.mxu0 0
  %247 = vmatprep.subr.bf16.mxu0 0
  %248 = vmatpush1.bf16.msra.mxu0 0
  %249 = vmatprep.subr.bf16.mxu0 0
  %250 = vmatpush1.bf16.msra.mxu0 0
  %251 = vmatprep.subr.bf16.mxu0 0
  %252 = vmatpush1.bf16.msra.mxu0 0
  %253 = vmatprep.subr.bf16.mxu0 0
  %254 = vmatpush1.bf16.msra.mxu0 0
  %255 = vmatprep.subr.bf16.mxu0 0
  %256 = vmatpush1.bf16.msra.mxu0 0
  %257 = vmatprep.subr.bf16.mxu0 0
  %258 = vmatpush1.bf16.msra.mxu0 0
  %259 = vmatprep.mubr.bf16.mxu0 0
  %260 = vmatmul.mubr.bf16.gmra.mrb[0].mxu0 %v52
  %v261 = vpop.f32.mrb[0].mxu0
  %v262 = vadd.f32 0.0, %v261
  %v263 = vpop.f32.mrb[0].mxu0
  %v264 = vpop.f32.mrb[0].mxu0
  %v265 = vadd.f32 0.0, %v264
  %v266 = vpop.f32.mrb[0].mxu0
  %267 = vmatprep.mubr.bf16.mxu0 0
  %268 = vmatmul.mubr.bf16.gmra.mrb[0].mxu0 %v53
  %v269 = vpop.f32.mrb[0].mxu0
  %v270 = vadd.f32 0.0, %v269
  %v271 = vpop.f32.mrb[0].mxu0
  %v272 = vpop.f32.mrb[0].mxu0
  %v273 = vadd.f32 0.0, %v272
  %v274 = vpop.f32.mrb[0].mxu0
  %275 = vmatprep.mubr.bf16.mxu0 0
  %276 = vmatmul.mubr.bf16.gmra.mrb[0].mxu0 %v54
  %v277 = vpop.f32.mrb[0].mxu0
  %v278 = vadd.f32 0.0, %v277
  %v279 = vpop.f32.mrb[0].mxu0
  %v280 = vpop.f32.mrb[0].mxu0
  %v281 = vpop.f32.mrb[0].mxu0
  %282 = vdwg.mxu0
  %s283 = scalar_lea.vmem %s1, 128
  %v284 = vld [vmem:[%s283] sm:$0xf]
  %v285 = vld [vmem:[%s283 + $0x4] sm:$0xf]
  %v286 = vld [vmem:[%s283 + $0x8] sm:$0xf]
  %v287 = vld [vmem:[%s283 + $0xc] sm:$0xf]
  %v288 = vld [vmem:[%s283 + $0x10] sm:$0xf]
  %v289 = vld [vmem:[%s283 + $0x14] sm:$0xf]
  %v290 = vld [vmem:[%s283 + $0x18] sm:$0xf]
  %v291 = vld [vmem:[%s283 + $0x1c] sm:$0xf]
  %v292 = vld [vmem:[%s283 + $0x20] sm:$0xf]
  %v293 = vld [vmem:[%s283 + $0x24] sm:$0xf]
  %v294 = vld [vmem:[%s283 + $0x28] sm:$0xf]
  %v295 = vld [vmem:[%s283 + $0x2c] sm:$0xf]
  %v296 = vld [vmem:[%s283 + $0x30] sm:$0xf]
  %v297 = vld [vmem:[%s283 + $0x34] sm:$0xf]
  %v298 = vld [vmem:[%s283 + $0x38] sm:$0xf]
  %v299 = vld [vmem:[%s283 + $0x3c] sm:$0xf]
  %v316 = vunpack.c.l.b16 %v284
  %v317 = vunpack.c.l.b16 %v285
  %v318 = vunpack.c.l.b16 %v286
  %v319 = vunpack.c.l.b16 %v287
  %v320 = vunpack.c.l.b16 %v288
  %v321 = vunpack.c.l.b16 %v289
  %v322 = vunpack.c.l.b16 %v290
  %v323 = vunpack.c.l.b16 %v291
  %v324 = vunpack.c.l.b16 %v292
  %v325 = vunpack.c.l.b16 %v293
  %v326 = vunpack.c.l.b16 %v294
  %v327 = vunpack.c.l.b16 %v295
  %v328 = vunpack.c.l.b16 %v296
  %v329 = vunpack.c.l.b16 %v297
  %v330 = vunpack.c.l.b16 %v298
  %v331 = vunpack.c.l.b16 %v299
  %v332 = vpack.c.b16 %v317, %v316
  %v333 = vpack.c.b16 %v319, %v318
  %v334 = vpack.c.b16 %v321, %v320
  %v335 = vpack.c.b16 %v323, %v322
  %v336 = vpack.c.b16 %v325, %v324
  %v337 = vpack.c.b16 %v327, %v326
  %v338 = vpack.c.b16 %v329, %v328
  %v339 = vpack.c.b16 %v331, %v330
  %348 = vmatprep.subr.bf16.mxu0 0
  %349 = vmatpush1.bf16.msra.mxu0 %v332
  %350 = vmatprep.subr.bf16.mxu0 0
  %351 = vmatpush1.bf16.msra.mxu0 %v333
  %352 = vmatprep.subr.bf16.mxu0 0
  %353 = vmatpush1.bf16.msra.mxu0 %v334
  %354 = vmatprep.subr.bf16.mxu0 0
  %355 = vmatpush1.bf16.msra.mxu0 %v335
  %356 = vmatprep.subr.bf16.mxu0 0
  %357 = vmatpush1.bf16.msra.mxu0 %v336
  %358 = vmatprep.subr.bf16.mxu0 0
  %359 = vmatpush1.bf16.msra.mxu0 %v337
  %360 = vmatprep.subr.bf16.mxu0 0
  %361 = vmatpush1.bf16.msra.mxu0 %v338
  %362 = vmatprep.subr.bf16.mxu0 0
  %363 = vmatpush1.bf16.msra.mxu0 %v339
  %364 = vmatprep.subr.bf16.mxu0 0
  %365 = vmatpush1.bf16.msra.mxu0 0
  %366 = vmatprep.subr.bf16.mxu0 0
  %367 = vmatpush1.bf16.msra.mxu0 0
  %368 = vmatprep.subr.bf16.mxu0 0
  %369 = vmatpush1.bf16.msra.mxu0 0
  %370 = vmatprep.subr.bf16.mxu0 0
  %371 = vmatpush1.bf16.msra.mxu0 0
  %372 = vmatprep.subr.bf16.mxu0 0
  %373 = vmatpush1.bf16.msra.mxu0 0
  %374 = vmatprep.subr.bf16.mxu0 0
  %375 = vmatpush1.bf16.msra.mxu0 0
  %376 = vmatprep.subr.bf16.mxu0 0
  %377 = vmatpush1.bf16.msra.mxu0 0
  %378 = vmatprep.subr.bf16.mxu0 0
  %379 = vmatpush1.bf16.msra.mxu0 0
  %380 = vmatprep.mubr.bf16.mxu0 0
  %381 = vmatmul.mubr.bf16.gmra.mrb[0].mxu0 %v52
  %v382 = vpop.f32.mrb[0].mxu0
  %v383 = vadd.f32 0.0, %v382
  %v384 = vpop.f32.mrb[0].mxu0
  %v385 = vpop.f32.mrb[0].mxu0
  %v386 = vadd.f32 0.0, %v385
  %v387 = vpop.f32.mrb[0].mxu0
  %388 = vmatprep.mubr.bf16.mxu0 0
  %389 = vmatmul.mubr.bf16.gmra.mrb[0].mxu0 %v53
  %v390 = vpop.f32.mrb[0].mxu0
  %v391 = vadd.f32 0.0, %v390
  %v392 = vpop.f32.mrb[0].mxu0
  %v393 = vpop.f32.mrb[0].mxu0
  %v394 = vadd.f32 0.0, %v393
  %v395 = vpop.f32.mrb[0].mxu0
  %396 = vmatprep.mubr.bf16.mxu0 0
  %397 = vmatmul.mubr.bf16.gmra.mrb[0].mxu0 %v54
  %v398 = vpop.f32.mrb[0].mxu0
  %v399 = vadd.f32 0.0, %v398
  %v400 = vpop.f32.mrb[0].mxu0
  %v401 = vpop.f32.mrb[0].mxu0
  %v402 = vpop.f32.mrb[0].mxu0
  %403 = vdwg.mxu0
  %vm409 = vcmask 1046528
  %v410 = vrot.slane %v262, 1
  %v411 = vrot.slane %v265, 1
  %v412 = vsel %vm409, %v410, %v411
  %v413 = vrot.slane %v270, 1
  %v414 = vsel %vm409, %v411, %v413
  %v415 = vrot.slane %v273, 1
  %v416 = vsel %vm409, %v413, %v415
  %v417 = vrot.slane %v278, 1
  %v418 = vsel %vm409, %v415, %v417
  %v424 = vadd.f32 %v141, %v412
  %v425 = vadd.f32 %v144, %v414
  %v426 = vadd.f32 %v149, %v416
  %v427 = vadd.f32 %v152, %v418
  %v428 = vadd.f32 %v157, %v417
  %vm434 = vcmask 1045504
  %v435 = vrot.slane %v383, 2
  %v436 = vrot.slane %v386, 2
  %v437 = vsel %vm434, %v435, %v436
  %v438 = vrot.slane %v391, 2
  %v439 = vsel %vm434, %v436, %v438
  %v440 = vrot.slane %v394, 2
  %v441 = vsel %vm434, %v438, %v440
  %v442 = vrot.slane %v399, 2
  %v443 = vsel %vm434, %v440, %v442
  %v449 = vadd.f32 %v424, %v437
  %v450 = vadd.f32 %v425, %v439
  %v451 = vadd.f32 %v426, %v441
  %v452 = vadd.f32 %v427, %v443
  %v453 = vadd.f32 %v428, %v442
  %v454 = vld [vmem:[%s2] sm:$0x1]
  %v456 = vlaneseq
  %v457 = vshrl.u32 %v456, 7
  %v458 = vsub.s32 0, %v457
  %v459 = vrot.slane %v454, %v458
  %v461 = vadd.f32 %v449, %v459
  %v462 = vadd.f32 %v450, %v459
  %v463 = vadd.f32 %v451, %v459
  %v464 = vadd.f32 %v452, %v459
  %v465 = vadd.f32 %v453, %v459
  %v466 = vmax.f32 %v461, 0.0
  %v467 = vmax.f32 %v462, 0.0
  %v468 = vmax.f32 %v463, 0.0
  %v469 = vmax.f32 %v464, 0.0
  %v470 = vmax.f32 %v465, 0.0
  %v471 = vlaneseq
  %v472 = vshrl.u32 %v471, 7
  %v473 = vadd.s32 %v472, 8
  %v474 = vadd.s32 %v472, 16
  %v475 = vadd.s32 %v472, 24
  %v476 = vadd.s32 %v472, 32
  %vm477 = vcmp.lt.s32.totalorder %v472, 0
  %v478 = vsub.s32 0, %v472
  %v479 = vsel %vm477, %v478, %v472
  %v480 = vmul.u32.u64.compose %v479, 3817748708
  %v481 = vextract.low.u32 %v480
  %v482 = vextract.high.u32 %v480
  %v483 = vshrl.u32 %v482, 4
  %v484 = vmul.u32 %v483, 18
  %v485 = vsub.s32 %v479, %v484
  %v486 = vsub.s32 0, %v485
  %v487 = vsel %vm477, %v486, %v485
  %vm488 = vcmp.lt.s32.totalorder %v473, 0
  %v489 = vsub.s32 0, %v473
  %v490 = vsel %vm488, %v489, %v473
  %v491 = vmul.u32.u64.compose %v490, 3817748708
  %v492 = vextract.low.u32 %v491
  %v493 = vextract.high.u32 %v491
  %v494 = vshrl.u32 %v493, 4
  %v495 = vmul.u32 %v494, 18
  %v496 = vsub.s32 %v490, %v495
  %v497 = vsub.s32 0, %v496
  %v498 = vsel %vm488, %v497, %v496
  %vm499 = vcmp.lt.s32.totalorder %v474, 0
  %v500 = vsub.s32 0, %v474
  %v501 = vsel %vm499, %v500, %v474
  %v502 = vmul.u32.u64.compose %v501, 3817748708
  %v503 = vextract.low.u32 %v502
  %v504 = vextract.high.u32 %v502
  %v505 = vshrl.u32 %v504, 4
  %v506 = vmul.u32 %v505, 18
  %v507 = vsub.s32 %v501, %v506
  %v508 = vsub.s32 0, %v507
  %v509 = vsel %vm499, %v508, %v507
  %vm510 = vcmp.lt.s32.totalorder %v475, 0
  %v511 = vsub.s32 0, %v475
  %v512 = vsel %vm510, %v511, %v475
  %v513 = vmul.u32.u64.compose %v512, 3817748708
  %v514 = vextract.low.u32 %v513
  %v515 = vextract.high.u32 %v513
  %v516 = vshrl.u32 %v515, 4
  %v517 = vmul.u32 %v516, 18
  %v518 = vsub.s32 %v512, %v517
  %v519 = vsub.s32 0, %v518
  %v520 = vsel %vm510, %v519, %v518
  %vm521 = vcmp.lt.s32.totalorder %v476, 0
  %v522 = vsub.s32 0, %v476
  %v523 = vsel %vm521, %v522, %v476
  %v524 = vmul.u32.u64.compose %v523, 3817748708
  %v525 = vextract.low.u32 %v524
  %v526 = vextract.high.u32 %v524
  %v527 = vshrl.u32 %v526, 4
  %v528 = vmul.u32 %v527, 18
  %v529 = vsub.s32 %v523, %v528
  %v530 = vsub.s32 0, %v529
  %v531 = vsel %vm521, %v530, %v529
  %vm532 = vcmp.ne.s32.totalorder %v487, 0
  %vm533 = vcmp.ne.s32.totalorder %v498, 0
  %vm534 = vcmp.ne.s32.totalorder %v509, 0
  %vm535 = vcmp.ne.s32.totalorder %v520, 0
  %vm536 = vcmp.ne.s32.totalorder %v531, 0
  %vm537 = vcmp.lt.s32.totalorder %v487, 0
  %vm538 = vcmp.lt.s32.totalorder %v498, 0
  %vm539 = vcmp.lt.s32.totalorder %v509, 0
  %vm540 = vcmp.lt.s32.totalorder %v520, 0
  %vm541 = vcmp.lt.s32.totalorder %v531, 0
  %vm542 = vmand %vm537, %vm532
  %vm543 = vmand %vm538, %vm533
  %vm544 = vmand %vm539, %vm534
  %vm545 = vmand %vm540, %vm535
  %vm546 = vmand %vm541, %vm536
  %v547 = vadd.s32 %v487, 18
  %v548 = vadd.s32 %v498, 18
  %v549 = vadd.s32 %v509, 18
  %v550 = vadd.s32 %v520, 18
  %v551 = vadd.s32 %v531, 18
  %v552 = vsel %vm542, %v547, %v487
  %v553 = vsel %vm543, %v548, %v498
  %v554 = vsel %vm544, %v549, %v509
  %v555 = vsel %vm545, %v550, %v520
  %v556 = vsel %vm546, %v551, %v531
  %vm557 = vcmp.lt.s32.totalorder %v552, 16
  %vm558 = vcmp.lt.s32.totalorder %v553, 16
  %vm559 = vcmp.lt.s32.totalorder %v554, 16
  %vm560 = vcmp.lt.s32.totalorder %v555, 16
  %vm561 = vcmp.lt.s32.totalorder %v556, 16
  %v562 = vsel %vm557, %v466, 0.0
  %v563 = vsel %vm558, %v467, 0.0
  %v564 = vsel %vm559, %v468, 0.0
  %v565 = vsel %vm560, %v469, 0.0
  %v566 = vsel %vm561, %v470, 0.0
  %567 = vst [vmem:[#allocation2] sm:$0x1] 0.0
  %568 = vst [vmem:[#allocation2 + $0x23] sm:$0x1] 0.0
  %569 = vst [vmem:[#allocation2 + $0x1] sm:$0xff] %v562
  %570 = vst [vmem:[#allocation2 + $0x9] sm:$0xff] %v563
  %571 = vst [vmem:[#allocation2 + $0x11] sm:$0xff] %v564
  %572 = vst [vmem:[#allocation2 + $0x19] sm:$0xff] %v565
  %573 = vst [vmem:[#allocation2 + $0x21] sm:$0x3] %v566
  %v574 = vld [vmem:[#allocation2] sm:$0xff]
  %v575 = vld [vmem:[#allocation2 + $0x8] sm:$0xff]
  %v576 = vld [vmem:[#allocation2 + $0x10] sm:$0xff]
  %v577 = vld [vmem:[#allocation2 + $0x18] sm:$0xff]
  %v578 = vld [vmem:[#allocation2 + $0x20] sm:$0x3]
  %v579 = vpack.c.bf16 %v575, %v574
  %v580 = vpack.c.bf16 %v577, %v576
  %v581 = vpack.c.bf16 %v578, %v578
  %v582 = vld [vmem:[%s3] sm:$0xf]
  %v583 = vld [vmem:[%s3 + $0x4] sm:$0xf]
  %v584 = vld [vmem:[%s3 + $0x8] sm:$0xf]
  %v585 = vld [vmem:[%s3 + $0xc] sm:$0xf]
  %v586 = vld [vmem:[%s3 + $0x10] sm:$0xf]
  %v587 = vld [vmem:[%s3 + $0x14] sm:$0xf]
  %v588 = vld [vmem:[%s3 + $0x18] sm:$0xf]
  %v589 = vld [vmem:[%s3 + $0x1c] sm:$0xf]
  %v590 = vld [vmem:[%s3 + $0x20] sm:$0xf]
  %v591 = vld [vmem:[%s3 + $0x24] sm:$0xf]
  %v592 = vld [vmem:[%s3 + $0x28] sm:$0xf]
  %v593 = vld [vmem:[%s3 + $0x2c] sm:$0xf]
  %v594 = vld [vmem:[%s3 + $0x30] sm:$0xf]
  %v595 = vld [vmem:[%s3 + $0x34] sm:$0xf]
  %v596 = vld [vmem:[%s3 + $0x38] sm:$0xf]
  %v597 = vld [vmem:[%s3 + $0x3c] sm:$0xf]
  %v598 = vld [vmem:[#allocation2 + $0x1] sm:$0xff]
  %v599 = vld [vmem:[#allocation2 + $0x9] sm:$0xff]
  %v600 = vld [vmem:[#allocation2 + $0x11] sm:$0xff]
  %v601 = vld [vmem:[#allocation2 + $0x19] sm:$0xff]
  %v602 = vld [vmem:[#allocation2 + $0x21] sm:$0x3]
  %v603 = vpack.c.bf16 %v599, %v598
  %v604 = vpack.c.bf16 %v601, %v600
  %v605 = vpack.c.bf16 %v602, %v602
  %s606 = scalar_lea.vmem %s3, 64
  %v607 = vld [vmem:[%s606] sm:$0xf]
  %v608 = vld [vmem:[%s606 + $0x4] sm:$0xf]
  %v609 = vld [vmem:[%s606 + $0x8] sm:$0xf]
  %v610 = vld [vmem:[%s606 + $0xc] sm:$0xf]
  %v611 = vld [vmem:[%s606 + $0x10] sm:$0xf]
  %v612 = vld [vmem:[%s606 + $0x14] sm:$0xf]
  %v613 = vld [vmem:[%s606 + $0x18] sm:$0xf]
  %v614 = vld [vmem:[%s606 + $0x1c] sm:$0xf]
  %v615 = vld [vmem:[%s606 + $0x20] sm:$0xf]
  %v616 = vld [vmem:[%s606 + $0x24] sm:$0xf]
  %v617 = vld [vmem:[%s606 + $0x28] sm:$0xf]
  %v618 = vld [vmem:[%s606 + $0x2c] sm:$0xf]
  %v619 = vld [vmem:[%s606 + $0x30] sm:$0xf]
  %v620 = vld [vmem:[%s606 + $0x34] sm:$0xf]
  %v621 = vld [vmem:[%s606 + $0x38] sm:$0xf]
  %v622 = vld [vmem:[%s606 + $0x3c] sm:$0xf]
  %v639 = vunpack.c.l.b16 %v607
  %v640 = vunpack.c.l.b16 %v608
  %v641 = vunpack.c.l.b16 %v609
  %v642 = vunpack.c.l.b16 %v610
  %v643 = vunpack.c.l.b16 %v611
  %v644 = vunpack.c.l.b16 %v612
  %v645 = vunpack.c.l.b16 %v613
  %v646 = vunpack.c.l.b16 %v614
  %v647 = vunpack.c.l.b16 %v615
  %v648 = vunpack.c.l.b16 %v616
  %v649 = vunpack.c.l.b16 %v617
  %v650 = vunpack.c.l.b16 %v618
  %v651 = vunpack.c.l.b16 %v619
  %v652 = vunpack.c.l.b16 %v620
  %v653 = vunpack.c.l.b16 %v621
  %v654 = vunpack.c.l.b16 %v622
  %v655 = vpack.c.b16 %v640, %v639
  %v656 = vpack.c.b16 %v642, %v641
  %v657 = vpack.c.b16 %v644, %v643
  %v658 = vpack.c.b16 %v646, %v645
  %v659 = vpack.c.b16 %v648, %v647
  %v660 = vpack.c.b16 %v650, %v649
  %v661 = vpack.c.b16 %v652, %v651
  %v662 = vpack.c.b16 %v654, %v653
  %671 = vmatprep.subr.bf16.mxu0 0
  %672 = vmatpush1.bf16.msra.mxu0 %v655
  %673 = vmatprep.subr.bf16.mxu0 0
  %674 = vmatpush1.bf16.msra.mxu0 %v656
  %675 = vmatprep.subr.bf16.mxu0 0
  %676 = vmatpush1.bf16.msra.mxu0 %v657
  %677 = vmatprep.subr.bf16.mxu0 0
  %678 = vmatpush1.bf16.msra.mxu0 %v658
  %679 = vmatprep.subr.bf16.mxu0 0
  %680 = vmatpush1.bf16.msra.mxu0 %v659
  %681 = vmatprep.subr.bf16.mxu0 0
  %682 = vmatpush1.bf16.msra.mxu0 %v660
  %683 = vmatprep.subr.bf16.mxu0 0
  %684 = vmatpush1.bf16.msra.mxu0 %v661
  %685 = vmatprep.subr.bf16.mxu0 0
  %686 = vmatpush1.bf16.msra.mxu0 %v662
  %687 = vmatprep.subr.bf16.mxu0 0
  %688 = vmatpush1.bf16.msra.mxu0 0
  %689 = vmatprep.subr.bf16.mxu0 0
  %690 = vmatpush1.bf16.msra.mxu0 0
  %691 = vmatprep.subr.bf16.mxu0 0
  %692 = vmatpush1.bf16.msra.mxu0 0
  %693 = vmatprep.subr.bf16.mxu0 0
  %694 = vmatpush1.bf16.msra.mxu0 0
  %695 = vmatprep.subr.bf16.mxu0 0
  %696 = vmatpush1.bf16.msra.mxu0 0
  %697 = vmatprep.subr.bf16.mxu0 0
  %698 = vmatpush1.bf16.msra.mxu0 0
  %699 = vmatprep.subr.bf16.mxu0 0
  %700 = vmatpush1.bf16.msra.mxu0 0
  %701 = vmatprep.subr.bf16.mxu0 0
  %702 = vmatpush1.bf16.msra.mxu0 0
  %703 = vmatprep.mubr.bf16.mxu0 0
  %704 = vmatmul.mubr.bf16.gmra.mrb[0].mxu0 %v603
  %v705 = vpop.f32.mrb[0].mxu0
  %v706 = vadd.f32 0.0, %v705
  %v707 = vpop.f32.mrb[0].mxu0
  %v708 = vpop.f32.mrb[0].mxu0
  %v709 = vadd.f32 0.0, %v708
  %v710 = vpop.f32.mrb[0].mxu0
  %711 = vmatprep.mubr.bf16.mxu0 0
  %712 = vmatmul.mubr.bf16.gmra.mrb[0].mxu0 %v604
  %v713 = vpop.f32.mrb[0].mxu0
  %v714 = vadd.f32 0.0, %v713
  %v715 = vpop.f32.mrb[0].mxu0
  %v716 = vpop.f32.mrb[0].mxu0
  %v717 = vadd.f32 0.0, %v716
  %v718 = vpop.f32.mrb[0].mxu0
  %719 = vmatprep.mubr.bf16.mxu0 0
  %720 = vmatmul.mubr.bf16.gmra.mrb[0].mxu0 %v605
  %v721 = vpop.f32.mrb[0].mxu0
  %v722 = vadd.f32 0.0, %v721
  %v723 = vpop.f32.mrb[0].mxu0
  %v724 = vpop.f32.mrb[0].mxu0
  %v725 = vpop.f32.mrb[0].mxu0
  %726 = vdwg.mxu0
  %v743 = vunpack.c.l.b16 %v582
  %v744 = vunpack.c.l.b16 %v583
  %v745 = vunpack.c.l.b16 %v584
  %v746 = vunpack.c.l.b16 %v585
  %v747 = vunpack.c.l.b16 %v586
  %v748 = vunpack.c.l.b16 %v587
  %v749 = vunpack.c.l.b16 %v588
  %v750 = vunpack.c.l.b16 %v589
  %v751 = vunpack.c.l.b16 %v590
  %v752 = vunpack.c.l.b16 %v591
  %v753 = vunpack.c.l.b16 %v592
  %v754 = vunpack.c.l.b16 %v593
  %v755 = vunpack.c.l.b16 %v594
  %v756 = vunpack.c.l.b16 %v595
  %v757 = vunpack.c.l.b16 %v596
  %v758 = vunpack.c.l.b16 %v597
  %v759 = vpack.c.b16 %v744, %v743
  %v760 = vpack.c.b16 %v746, %v745
  %v761 = vpack.c.b16 %v748, %v747
  %v762 = vpack.c.b16 %v750, %v749
  %v763 = vpack.c.b16 %v752, %v751
  %v764 = vpack.c.b16 %v754, %v753
  %v765 = vpack.c.b16 %v756, %v755
  %v766 = vpack.c.b16 %v758, %v757
  %775 = vmatprep.subr.bf16.mxu0 0
  %776 = vmatpush1.bf16.msra.mxu0 %v759
  %777 = vmatprep.subr.bf16.mxu0 0
  %778 = vmatpush1.bf16.msra.mxu0 %v760
  %779 = vmatprep.subr.bf16.mxu0 0
  %780 = vmatpush1.bf16.msra.mxu0 %v761
  %781 = vmatprep.subr.bf16.mxu0 0
  %782 = vmatpush1.bf16.msra.mxu0 %v762
  %783 = vmatprep.subr.bf16.mxu0 0
  %784 = vmatpush1.bf16.msra.mxu0 %v763
  %785 = vmatprep.subr.bf16.mxu0 0
  %786 = vmatpush1.bf16.msra.mxu0 %v764
  %787 = vmatprep.subr.bf16.mxu0 0
  %788 = vmatpush1.bf16.msra.mxu0 %v765
  %789 = vmatprep.subr.bf16.mxu0 0
  %790 = vmatpush1.bf16.msra.mxu0 %v766
  %791 = vmatprep.subr.bf16.mxu0 0
  %792 = vmatpush1.bf16.msra.mxu0 0
  %793 = vmatprep.subr.bf16.mxu0 0
  %794 = vmatpush1.bf16.msra.mxu0 0
  %795 = vmatprep.subr.bf16.mxu0 0
  %796 = vmatpush1.bf16.msra.mxu0 0
  %797 = vmatprep.subr.bf16.mxu0 0
  %798 = vmatpush1.bf16.msra.mxu0 0
  %799 = vmatprep.subr.bf16.mxu0 0
  %800 = vmatpush1.bf16.msra.mxu0 0
  %801 = vmatprep.subr.bf16.mxu0 0
  %802 = vmatpush1.bf16.msra.mxu0 0
  %803 = vmatprep.subr.bf16.mxu0 0
  %804 = vmatpush1.bf16.msra.mxu0 0
  %805 = vmatprep.subr.bf16.mxu0 0
  %806 = vmatpush1.bf16.msra.mxu0 0
  %807 = vmatprep.mubr.bf16.mxu0 0
  %808 = vmatmul.mubr.bf16.gmra.mrb[0].mxu0 %v579
  %v809 = vpop.f32.mrb[0].mxu0
  %v810 = vadd.f32 %v706, %v809
  %v811 = vpop.f32.mrb[0].mxu0
  %v812 = vpop.f32.mrb[0].mxu0
  %v813 = vadd.f32 %v709, %v812
  %v814 = vpop.f32.mrb[0].mxu0
  %815 = vmatprep.mubr.bf16.mxu0 0
  %816 = vmatmul.mubr.bf16.gmra.mrb[0].mxu0 %v580
  %v817 = vpop.f32.mrb[0].mxu0
  %v818 = vadd.f32 %v714, %v817
  %v819 = vpop.f32.mrb[0].mxu0
  %v820 = vpop.f32.mrb[0].mxu0
  %v821 = vadd.f32 %v717, %v820
  %v822 = vpop.f32.mrb[0].mxu0
  %823 = vmatprep.mubr.bf16.mxu0 0
  %824 = vmatmul.mubr.bf16.gmra.mrb[0].mxu0 %v581
  %v825 = vpop.f32.mrb[0].mxu0
  %v826 = vadd.f32 %v722, %v825
  %v827 = vpop.f32.mrb[0].mxu0
  %v828 = vpop.f32.mrb[0].mxu0
  %v829 = vpop.f32.mrb[0].mxu0
  %830 = vdwg.mxu0
  %v831 = vld [vmem:[#allocation2 + $0x2] sm:$0xff]
  %v832 = vld [vmem:[#allocation2 + $0xa] sm:$0xff]
  %v833 = vld [vmem:[#allocation2 + $0x12] sm:$0xff]
  %v834 = vld [vmem:[#allocation2 + $0x1a] sm:$0xff]
  %v835 = vld [vmem:[#allocation2 + $0x22] sm:$0x3]
  %v836 = vpack.c.bf16 %v832, %v831
  %v837 = vpack.c.bf16 %v834, %v833
  %v838 = vpack.c.bf16 %v835, %v835
  %s839 = scalar_lea.vmem %s3, 128
  %v840 = vld [vmem:[%s839] sm:$0xf]
  %v841 = vld [vmem:[%s839 + $0x4] sm:$0xf]
  %v842 = vld [vmem:[%s839 + $0x8] sm:$0xf]
  %v843 = vld [vmem:[%s839 + $0xc] sm:$0xf]
  %v844 = vld [vmem:[%s839 + $0x10] sm:$0xf]
  %v845 = vld [vmem:[%s839 + $0x14] sm:$0xf]
  %v846 = vld [vmem:[%s839 + $0x18] sm:$0xf]
  %v847 = vld [vmem:[%s839 + $0x1c] sm:$0xf]
  %v848 = vld [vmem:[%s839 + $0x20] sm:$0xf]
  %v849 = vld [vmem:[%s839 + $0x24] sm:$0xf]
  %v850 = vld [vmem:[%s839 + $0x28] sm:$0xf]
  %v851 = vld [vmem:[%s839 + $0x2c] sm:$0xf]
  %v852 = vld [vmem:[%s839 + $0x30] sm:$0xf]
  %v853 = vld [vmem:[%s839 + $0x34] sm:$0xf]
  %v854 = vld [vmem:[%s839 + $0x38] sm:$0xf]
  %v855 = vld [vmem:[%s839 + $0x3c] sm:$0xf]
  %v872 = vunpack.c.l.b16 %v840
  %v873 = vunpack.c.l.b16 %v841
  %v874 = vunpack.c.l.b16 %v842
  %v875 = vunpack.c.l.b16 %v843
  %v876 = vunpack.c.l.b16 %v844
  %v877 = vunpack.c.l.b16 %v845
  %v878 = vunpack.c.l.b16 %v846
  %v879 = vunpack.c.l.b16 %v847
  %v880 = vunpack.c.l.b16 %v848
  %v881 = vunpack.c.l.b16 %v849
  %v882 = vunpack.c.l.b16 %v850
  %v883 = vunpack.c.l.b16 %v851
  %v884 = vunpack.c.l.b16 %v852
  %v885 = vunpack.c.l.b16 %v853
  %v886 = vunpack.c.l.b16 %v854
  %v887 = vunpack.c.l.b16 %v855
  %v888 = vpack.c.b16 %v873, %v872
  %v889 = vpack.c.b16 %v875, %v874
  %v890 = vpack.c.b16 %v877, %v876
  %v891 = vpack.c.b16 %v879, %v878
  %v892 = vpack.c.b16 %v881, %v880
  %v893 = vpack.c.b16 %v883, %v882
  %v894 = vpack.c.b16 %v885, %v884
  %v895 = vpack.c.b16 %v887, %v886
  %904 = vmatprep.subr.bf16.mxu0 0
  %905 = vmatpush1.bf16.msra.mxu0 %v888
  %906 = vmatprep.subr.bf16.mxu0 0
  %907 = vmatpush1.bf16.msra.mxu0 %v889
  %908 = vmatprep.subr.bf16.mxu0 0
  %909 = vmatpush1.bf16.msra.mxu0 %v890
  %910 = vmatprep.subr.bf16.mxu0 0
  %911 = vmatpush1.bf16.msra.mxu0 %v891
  %912 = vmatprep.subr.bf16.mxu0 0
  %913 = vmatpush1.bf16.msra.mxu0 %v892
  %914 = vmatprep.subr.bf16.mxu0 0
  %915 = vmatpush1.bf16.msra.mxu0 %v893
  %916 = vmatprep.subr.bf16.mxu0 0
  %917 = vmatpush1.bf16.msra.mxu0 %v894
  %918 = vmatprep.subr.bf16.mxu0 0
  %919 = vmatpush1.bf16.msra.mxu0 %v895
  %920 = vmatprep.subr.bf16.mxu0 0
  %921 = vmatpush1.bf16.msra.mxu0 0
  %922 = vmatprep.subr.bf16.mxu0 0
  %923 = vmatpush1.bf16.msra.mxu0 0
  %924 = vmatprep.subr.bf16.mxu0 0
  %925 = vmatpush1.bf16.msra.mxu0 0
  %926 = vmatprep.subr.bf16.mxu0 0
  %927 = vmatpush1.bf16.msra.mxu0 0
  %928 = vmatprep.subr.bf16.mxu0 0
  %929 = vmatpush1.bf16.msra.mxu0 0
  %930 = vmatprep.subr.bf16.mxu0 0
  %931 = vmatpush1.bf16.msra.mxu0 0
  %932 = vmatprep.subr.bf16.mxu0 0
  %933 = vmatpush1.bf16.msra.mxu0 0
  %934 = vmatprep.subr.bf16.mxu0 0
  %935 = vmatpush1.bf16.msra.mxu0 0
  %936 = vmatprep.mubr.bf16.mxu0 0
  %937 = vmatmul.mubr.bf16.gmra.mrb[0].mxu0 %v836
  %v938 = vpop.f32.mrb[0].mxu0
  %v939 = vadd.f32 0.0, %v938
  %v940 = vpop.f32.mrb[0].mxu0
  %v941 = vpop.f32.mrb[0].mxu0
  %v942 = vadd.f32 0.0, %v941
  %v943 = vpop.f32.mrb[0].mxu0
  %944 = vmatprep.mubr.bf16.mxu0 0
  %945 = vmatmul.mubr.bf16.gmra.mrb[0].mxu0 %v837
  %v946 = vpop.f32.mrb[0].mxu0
  %v947 = vadd.f32 0.0, %v946
  %v948 = vpop.f32.mrb[0].mxu0
  %v949 = vpop.f32.mrb[0].mxu0
  %v950 = vadd.f32 0.0, %v949
  %v951 = vpop.f32.mrb[0].mxu0
  %952 = vmatprep.mubr.bf16.mxu0 0
  %953 = vmatmul.mubr.bf16.gmra.mrb[0].mxu0 %v838
  %v954 = vpop.f32.mrb[0].mxu0
  %v955 = vadd.f32 0.0, %v954
  %v956 = vpop.f32.mrb[0].mxu0
  %v957 = vpop.f32.mrb[0].mxu0
  %v958 = vpop.f32.mrb[0].mxu0
  %959 = vdwg.mxu0
  %v960 = vadd.f32 %v810, %v939
  %v961 = vadd.f32 %v813, %v942
  %v962 = vadd.f32 %v818, %v947
  %v963 = vadd.f32 %v821, %v950
  %v964 = vadd.f32 %v826, %v955
  %v965 = vld [vmem:[%s4] sm:$0x1]
  %v967 = vlaneseq
  %v968 = vshrl.u32 %v967, 7
  %v969 = vsub.s32 0, %v968
  %v970 = vrot.slane %v965, %v969
  %v972 = vadd.f32 %v960, %v970
  %v973 = vadd.f32 %v961, %v970
  %v974 = vadd.f32 %v962, %v970
  %v975 = vadd.f32 %v963, %v970
  %v976 = vadd.f32 %v964, %v970
  %v977 = vmax.f32 %v972, 0.0
  %v978 = vmax.f32 %v973, 0.0
  %v979 = vmax.f32 %v974, 0.0
  %v980 = vmax.f32 %v975, 0.0
  %v981 = vmax.f32 %v976, 0.0
  %982 = vst [vmem:[%s5] sm:$0xff] %v977
  %983 = vst [vmem:[%s5 + $0x8] sm:$0xff] %v978
  %984 = vst [vmem:[%s5 + $0xe] sm:$0xfc] %v979
  %985 = vst [vmem:[%s5 + $0x16] sm:$0xff] %v980
  %986 = vst [vmem:[%s5 + $0x1e] sm:$0x3] %v981
  // Predicated region
  $region22: #{up_forward.1} parent=0 // pred_check
    _
  $region23: #{up_forward.1} parent=0 // pred_check_branch
    %988 = sbr.rel (0) target = $region25
  $region24: #{up_forward.1} parent=0 // pred_region
    _
  $region25: #{up_forward.1} parent=0 // pred_fallthru
    _
  // Predicated region
  $region26: #{up_forward.1} parent=0 // pred_check
    _
  $region27: #{up_forward.1} parent=0 // pred_check_branch
    %990 = sbr.rel (0) target = $region29
  $region28: #{up_forward.1} parent=0 // pred_region
    _
  $region29: #{up_forward.1} parent=0 // pred_fallthru
    _

</llo_original>
